<compile_context>
chip_gen: v5e
topology: v5e:2x2
jax: 0.10.0
libtpu: 0.0.40
codegen_flags: <defaults>
</compile_context>

<pallas_src>
import functools
import numpy as np
import jax
import jax.numpy as jnp
from jax.experimental import pallas as pl
from jax.experimental.pallas import tpu as pltpu


def _round_up(x, m):
    return (x + m - 1) // m * m


# ------------------------------------------------------------------------------------
# Tile-size selection helpers (keep last dim lane-dense, second-to-last sublane-dense)
# ------------------------------------------------------------------------------------

def _pick_m(n, cap=256):
    """Sublane (second-to-last) dim: multiple of 8, capped."""
    np8 = _round_up(n, 8)
    if np8 <= cap:
        return np8, np8
    return cap, _round_up(n, cap)


def _pick_lane(n, cap=512):
    """Lane (last) dim: full dim if small, else a 128-multiple divisor, else pad."""
    if n <= cap:
        return n, n
    for t in (2048, 1024, 512, 256, 128):
        if t <= cap and n % t == 0:
            return t, n
    t = min(cap, 512)
    return t, _round_up(n, t)


def _pick_k(n):
    """Contraction dim: keep full (single k-step) up to 2304, else 512/256/128 chunks."""
    if n <= 2304:
        return n, n
    return _pick_lane(n, cap=512)


# ------------------------------------------------------------------------------------
# Pallas kernels
# ------------------------------------------------------------------------------------

def _matmul_kernel(*refs, relu, has_shift, has_res):
    """acc += x @ w (bf16 operands, f32 acc); epilogue: + shift, + residual, ReLU, cast."""
    x_ref, w_ref = refs[0], refs[1]
    i = 2
    s_ref = None
    r_ref = None
    if has_shift:
        s_ref = refs[i]
        i += 1
    if has_res:
        r_ref = refs[i]
        i += 1
    o_ref, acc_ref = refs[i], refs[i + 1]
    k = pl.program_id(2)

    @pl.when(k == 0)
    def _():
        acc_ref[...] = jnp.zeros_like(acc_ref)

    acc_ref[...] += jnp.dot(x_ref[...], w_ref[...], preferred_element_type=jnp.float32)

    @pl.when(k == pl.num_programs(2) - 1)
    def _():
        y = acc_ref[...]
        if has_shift:
            y = y + s_ref[...]
        if has_res:
            y = y + r_ref[...].astype(jnp.float32)
        if relu:
            y = jnp.maximum(y, 0.0)
        o_ref[...] = y.astype(o_ref.dtype)


def matmul_bias_act(x, w, shift=None, residual=None, relu=False, out_dtype=jnp.bfloat16):
    """Tiled MXU matmul with fused per-column shift + optional residual add + ReLU.

    x: (M, K), w: (K, N) -- cast to bf16; accumulation in f32; output out_dtype.
    residual (optional): (M, N), added before the ReLU (used for bottleneck skips).
    """
    M, K = x.shape
    K2, Nn = w.shape
    assert K == K2
    tm, Mp = _pick_m(M)
    tk, Kp = _pick_k(K)
    tn, Np = _pick_lane(Nn, cap=512)

    if (Mp, Kp) != (M, K):
        x = jnp.pad(x, ((0, Mp - M), (0, Kp - K)))
    if (Kp, Np) != (K, Nn):
        w = jnp.pad(w, ((0, Kp - K), (0, Np - Nn)))
    x = x.astype(jnp.bfloat16)
    w = w.astype(jnp.bfloat16)

    has_shift = shift is not None
    has_res = residual is not None
    operands = [x, w]
    in_specs = [pl.BlockSpec((tm, tk), lambda i, j, k: (i, k)),
                pl.BlockSpec((tk, tn), lambda i, j, k: (k, j))]
    if has_shift:
        s = shift.astype(jnp.float32)
        if Np != Nn:
            s = jnp.pad(s, (0, Np - Nn))
        operands.append(s.reshape(1, Np))
        in_specs.append(pl.BlockSpec((1, tn), lambda i, j, k: (0, j)))
    if has_res:
        r = residual.astype(jnp.bfloat16)
        if (Mp, Np) != (M, Nn):
            r = jnp.pad(r, ((0, Mp - M), (0, Np - Nn)))
        operands.append(r)
        in_specs.append(pl.BlockSpec((tm, tn), lambda i, j, k: (i, j)))

    grid = (Mp // tm, Np // tn, Kp // tk)
    out = pl.pallas_call(
        functools.partial(_matmul_kernel, relu=relu, has_shift=has_shift, has_res=has_res),
        out_shape=jax.ShapeDtypeStruct((Mp, Np), out_dtype),
        grid_spec=pltpu.PrefetchScalarGridSpec(
            num_scalar_prefetch=0,
            grid=grid,
            in_specs=in_specs,
            out_specs=pl.BlockSpec((tm, tn), lambda i, j, k: (i, j)),
            scratch_shapes=[pltpu.VMEM((tm, tn), jnp.float32)],
        ),
        compiler_params=pltpu.CompilerParams(
            dimension_semantics=("parallel", "parallel", "arbitrary")),
    )(*operands)
    if (Mp, Np) != (M, Nn):
        out = out[:M, :Nn]
    return out


def _maxpool_kernel(x_ref, o_ref):
    x = x_ref[...]
    m = x[0]
    for t in range(1, x.shape[0]):          # static unroll over the k*k taps
        m = jnp.maximum(m, x[t])
    o_ref[...] = m


def pallas_maxpool2d(x, k=3, stride=2, padding=1):
    """MaxPool2d on NHWC bf16; elementwise k*k max over lane-dense (rows, Wo*C) tiles."""
    N, H, W, C = x.shape
    Ho = (H + 2 * padding - k) // stride + 1
    Wo = (W + 2 * padding - k) // stride + 1
    xp = jnp.pad(x, ((0, 0), (padding,) * 2, (padding,) * 2, (0, 0)),
                 constant_values=-jnp.inf)
    # TODO(synk): fuse the pooling taps into the following conv's input gather to avoid the
    #             k*k stacked temporary entirely (small: runs once on the 64-ch stem output).
    slices = []
    for di in range(k):
        for dj in range(k):
            sl = xp[:, di:di + (Ho - 1) * stride + 1:stride,
                    dj:dj + (Wo - 1) * stride + 1:stride, :]
            slices.append(sl.reshape(N * Ho, Wo * C))
    st = jnp.stack(slices, axis=0)                       # (k*k, R, L), L lane-dense
    R, L = N * Ho, Wo * C
    tr, Rp = _pick_m(R)
    tl, Lp = _pick_lane(L, cap=1024)
    if (Rp, Lp) != (R, L):
        st = jnp.pad(st, ((0, 0), (0, Rp - R), (0, Lp - L)), constant_values=-jnp.inf)
    out = pl.pallas_call(
        _maxpool_kernel,
        out_shape=jax.ShapeDtypeStruct((Rp, Lp), x.dtype),
        grid=(Rp // tr, Lp // tl),
        in_specs=[pl.BlockSpec((k * k, tr, tl), lambda i, j: (0, i, j))],
        out_specs=pl.BlockSpec((tr, tl), lambda i, j: (i, j)),
    )(st)
    if (Rp, Lp) != (R, L):
        out = out[:R, :L]
    return out.reshape(N, Ho, Wo, C)


# ------------------------------------------------------------------------------------
# Conv wrappers (NHWC): 1x1 = direct matmul; k>1 = NHWC im2col + matmul
# ------------------------------------------------------------------------------------

def conv_bn_act(x, p, *, stride=1, padding=0, dilation=1, relu=True, residual=None,
                out_dtype=jnp.bfloat16):
    """Conv2d (PyTorch semantics) with pre-folded BN scale and fused shift/residual/ReLU."""
    N, H, W, C = x.shape
    k = p['k']
    if k == 1:
        if stride > 1:
            x = x[:, ::stride, ::stride, :]
        Ho, Wo = x.shape[1], x.shape[2]
        res2 = residual.reshape(N * Ho * Wo, -1) if residual is not None else None
        y = matmul_bias_act(x.reshape(N * Ho * Wo, C), p['w'], p['shift'],
                            residual=res2, relu=relu, out_dtype=out_dtype)
        return y.reshape(N, Ho, Wo, -1)

    Ho = (H + 2 * padding - dilation * (k - 1) - 1) // stride + 1
    Wo = (W + 2 * padding - dilation * (k - 1) - 1) // stride + 1
    xp = jnp.pad(x, ((0, 0), (padding,) * 2, (padding,) * 2, (0, 0)))
    # TODO(synk): for stride-1 3x3 convs the k*k taps could be folded into the matmul K grid
    #             (manual-DMA shifted slabs) to avoid materializing the k*k-inflated patches.
    cols = []
    for di in range(k):
        for dj in range(k):
            h0, w0 = di * dilation, dj * dilation
            cols.append(xp[:, h0:h0 + (Ho - 1) * stride + 1:stride,
                           w0:w0 + (Wo - 1) * stride + 1:stride, :])
    pat = jnp.concatenate(cols, axis=-1).reshape(N * Ho * Wo, k * k * C)
    res2 = residual.reshape(N * Ho * Wo, -1) if residual is not None else None
    y = matmul_bias_act(pat, p['w'], p['shift'], residual=res2, relu=relu,
                        out_dtype=out_dtype)
    return y.reshape(N, Ho, Wo, -1)


# ------------------------------------------------------------------------------------
# Bilinear resize (align_corners=False, PyTorch formula) as two small no-affine matmuls
# ------------------------------------------------------------------------------------

def _interp_matrix(in_size, out_size):
    A = np.zeros((out_size, in_size), dtype=np.float32)
    if in_size == 1:
        A[:, 0] = 1.0
        return jnp.asarray(A)
    scale = in_size / out_size
    for i in range(out_size):
        src = max((i + 0.5) * scale - 0.5, 0.0)
        i0 = min(int(np.floor(src)), in_size - 1)
        i1 = min(i0 + 1, in_size - 1)
        frac = src - i0
        A[i, i0] += 1.0 - frac
        A[i, i1] += frac
    return jnp.asarray(A)


def bilinear_resize_nchw(z_nhwc, out_h, out_w):
    """NHWC (bf16) -> bilinear upsample -> NCHW float32 (matches F.interpolate)."""
    N, h, w, c = z_nhwc.shape
    t = jnp.transpose(z_nhwc, (0, 3, 1, 2))             # tiny classifier output only
    Aw = jnp.asarray(_interp_matrix(w, out_w), jnp.bfloat16)
    Ah = jnp.asarray(_interp_matrix(h, out_h), jnp.bfloat16)
    y = matmul_bias_act(t.reshape(N * c * h, w), Aw.T, shift=None, relu=False,
                        out_dtype=jnp.bfloat16)
    y = y.reshape(N, c, h, out_w).transpose(0, 1, 3, 2).reshape(N * c * out_w, h)
    y = matmul_bias_act(y, Ah.T, shift=None, relu=False, out_dtype=jnp.float32)
    return y.reshape(N, c, out_w, out_h).transpose(0, 1, 3, 2)


# ------------------------------------------------------------------------------------
# Deterministic parameters (shapes as torchvision deeplabv3_resnet50), pre-folded
# ------------------------------------------------------------------------------------

def _prep_conv(w_oihw, scale, shift):
    """OIHW conv weight -> matmul-ready (K, Cout) bf16 with BN scale folded in."""
    cout, cin, kh, kw = w_oihw.shape
    if kh == 1 and kw == 1:
        wm = w_oihw.reshape(cout, cin).T
    else:
        # row index = (di*kw + dj)*cin + c  -- matches the NHWC im2col channel order
        wm = w_oihw.transpose(2, 3, 1, 0).reshape(kh * kw * cin, cout)
    wm = wm * scale[None, :]
    return {'w': jnp.asarray(wm, jnp.bfloat16),
            'shift': jnp.asarray(shift, jnp.float32),
            'k': kh}


class _ParamGen:
    def __init__(self, seed=0):
        self._key = jax.random.PRNGKey(seed)
        self._n = 0

    def _next(self):
        self._n += 1
        return jax.random.fold_in(self._key, self._n)

    def _conv_w(self, cin, cout, k):
        std = (2.0 / (cin * k * k)) ** 0.5
        return std * jax.random.normal(self._next(), (cout, cin, k, k), jnp.float32)

    def _bn(self, c, eps=1e-5):
        # TODO(synk): eval-mode BatchNorm only (running stats); train-mode batch stats
        #             not implemented.
        gamma = 1.0 + 0.01 * jax.random.normal(self._next(), (c,), jnp.float32)
        beta = 0.01 * jax.random.normal(self._next(), (c,), jnp.float32)
        running_mean = jnp.zeros((c,), jnp.float32)
        running_var = jnp.ones((c,), jnp.float32)
        scale = gamma / jnp.sqrt(running_var + eps)
        shift = beta - running_mean * scale
        return scale, shift

    def conv_bn(self, cin, cout, k):
        w = self._conv_w(cin, cout, k)
        scale, shift = self._bn(cout)
        return _prep_conv(w, scale, shift)

    def conv_bias(self, cin, cout, k):
        w = self._conv_w(cin, cout, k)
        b = 0.01 * jax.random.normal(self._next(), (cout,), jnp.float32)
        return _prep_conv(w, jnp.ones((cout,), jnp.float32), b)


def _make_bottleneck(pg, inplanes, planes, stride, dilation, downsample):
    p = {'stride': stride, 'dilation': dilation}
    p['conv1'] = pg.conv_bn(inplanes, planes, 1)
    p['conv2'] = pg.conv_bn(planes, planes, 3)
    p['conv3'] = pg.conv_bn(planes, planes * 4, 1)
    if downsample:
        p['down'] = pg.conv_bn(inplanes, planes * 4, 1)
    return p


def _make_layer(pg, inplanes, planes, blocks, stride, dilate, dilation):
    previous_dilation = dilation
    if dilate:                       # replace_stride_with_dilation
        dilation *= stride
        stride = 1
    layers = []
    downsample = (stride != 1) or (inplanes != planes * 4)
    layers.append(_make_bottleneck(pg, inplanes, planes, stride, previous_dilation, downsample))
    inplanes = planes * 4
    for _ in range(blocks - 1):
        layers.append(_make_bottleneck(pg, inplanes, planes, 1, dilation, False))
    return layers, inplanes, dilation


def make_model_params(num_classes, seed=0):
    pg = _ParamGen(seed)
    bb = {'stem': pg.conv_bn(3, 64, 7)}
    inplanes, dilation = 64, 1
    cfg = [('layer1', 64, 3, 1, False), ('layer2', 128, 4, 2, False),
           ('layer3', 256, 6, 2, True), ('layer4', 512, 3, 2, True)]
    for name, planes, blocks, stride, dilate in cfg:
        bb[name], inplanes, dilation = _make_layer(pg, inplanes, planes, blocks,
                                                   stride, dilate, dilation)
    hp = {'aspp0': pg.conv_bn(2048, 256, 1), 'aspp_rates': (12, 24, 36)}
    for i, _r in enumerate(hp['aspp_rates'], start=1):
        hp[f'aspp{i}'] = pg.conv_bn(2048, 256, 3)
    hp['aspp_pool'] = pg.conv_bn(2048, 256, 1)
    hp['aspp_proj'] = pg.conv_bn(5 * 256, 256, 1)
    hp['head'] = pg.conv_bn(256, 256, 3)
    hp['cls'] = pg.conv_bias(256, num_classes, 1)
    return {'backbone': bb, 'head': hp}


# ------------------------------------------------------------------------------------
# Forward pass (== SomeCrazyModel.forward -> self.seg(x)['out'])
# ------------------------------------------------------------------------------------

def _bottleneck_forward(x, p):
    # identity branch first so it can be fused into the conv3 epilogue
    if 'down' in p:
        identity = conv_bn_act(x, p['down'], stride=p['stride'], relu=False)
    else:
        identity = x
    out = conv_bn_act(x, p['conv1'], relu=True)
    out = conv_bn_act(out, p['conv2'], stride=p['stride'],
                      padding=p['dilation'], dilation=p['dilation'], relu=True)
    # conv3 (no ReLU) + residual add + ReLU fused into one matmul epilogue
    out = conv_bn_act(out, p['conv3'], relu=True, residual=identity)
    return out


def deeplabv3_forward(x_nchw, params):
    N, _, H, W = x_nchw.shape
    bp, hp = params['backbone'], params['head']

    # single entry-point layout/dtype change: NCHW f32 -> NHWC bf16
    y = jnp.transpose(x_nchw, (0, 2, 3, 1)).astype(jnp.bfloat16)

    # ResNet-50 backbone (output_stride=8)
    y = conv_bn_act(y, bp['stem'], stride=2, padding=3, relu=True)
    y = pallas_maxpool2d(y, k=3, stride=2, padding=1)
    for name in ('layer1', 'layer2', 'layer3', 'layer4'):
        for blk in bp[name]:
            y = _bottleneck_forward(y, blk)

    # DeepLabHead: ASPP
    n, h, w, _ = y.shape
    branches = [conv_bn_act(y, hp['aspp0'], relu=True)]
    for i, r in enumerate(hp['aspp_rates'], start=1):
        branches.append(conv_bn_act(y, hp[f'aspp{i}'], padding=r, dilation=r, relu=True))
    pooled = jnp.mean(y.astype(jnp.float32), axis=(1, 2), keepdims=True).astype(jnp.bfloat16)
    pb = conv_bn_act(pooled, hp['aspp_pool'], relu=True)
    branches.append(jnp.broadcast_to(pb, (n, h, w, pb.shape[-1])))  # 1x1 bilinear up == bcast
    # TODO(synk): the 5-branch concat could be skipped by accumulating the 1280->256 projection
    #             per branch (K-grid over branches) and folding the pooled branch into the bias.
    cat = jnp.concatenate(branches, axis=-1)
    z = conv_bn_act(cat, hp['aspp_proj'], relu=True)
    # TODO(synk): Dropout(0.5) is identity in eval mode; train-mode dropout not implemented.

    z = conv_bn_act(z, hp['head'], padding=1, relu=True)
    z = conv_bn_act(z, hp['cls'], relu=False)

    # Final F.interpolate(..., size=(H, W), mode='bilinear', align_corners=False) -> NCHW f32
    return bilinear_resize_nchw(z, H, W)


if __name__ == "__main__":
    chout = 5
    key = jax.random.PRNGKey(0)
    x = jax.random.normal(key, (2, 3, 16, 16), jnp.float32)   # NCHW, like PyTorch
    params = make_model_params(num_classes=chout, seed=0)
    out = deeplabv3_forward(x, params)
    out = jax.block_until_ready(out)
    assert out.shape == (2, chout, 16, 16), out.shape
    assert bool(jnp.all(jnp.isfinite(out)))
    print("KERNEL_OK")
</pallas_src>

<mosaic_0001>
module attributes {stable_mosaic.version = 11 : i64} {
  func.func @_matmul_kernel(%arg0: i32, %arg1: i32, %arg2: i32, %arg3: memref<128x147xbf16, #tpu.memory_space<vmem>>, %arg4: memref<147x64xbf16, #tpu.memory_space<vmem>>, %arg5: memref<1x64xf32, #tpu.memory_space<vmem>>, %arg6: memref<128x64xbf16, #tpu.memory_space<vmem>>, %arg7: memref<128x64xf32, #tpu.memory_space<vmem>>) attributes {dimension_semantics = [#tpu.dimension_semantics<parallel>, #tpu.dimension_semantics<parallel>, #tpu.dimension_semantics<arbitrary>], iteration_bounds = array<i64: 1, 1, 1>, scalar_prefetch = 0 : i64, scratch_operands = 1 : i64, tpu.core_type = #tpu.core_type<tc>, window_params = [{transform_indices = @transform_0, window_bounds = array<i64: 128, 147>}, {transform_indices = @transform_1, window_bounds = array<i64: 147, 64>}, {transform_indices = @transform_2, window_bounds = array<i64: 1, 64>}, {transform_indices = @transform_3, window_bounds = array<i64: 128, 64>}]} {
    %c0_i32 = arith.constant 0 : i32
    %0 = arith.cmpi eq, %arg2, %c0_i32 : i32
    %1 = arith.extui %0 : i1 to i32
    %c0_i32_0 = arith.constant 0 : i32
    %2 = arith.cmpi ne, %1, %c0_i32_0 : i32
    scf.if %2 {
      %cst_10 = arith.constant 0.000000e+00 : f32
      %12 = vector.broadcast %cst_10 : f32 to vector<128x64xf32>
      %c0_11 = arith.constant 0 : index
      %c0_12 = arith.constant 0 : index
      %13 = vector.load %arg7[%c0_11, %c0_12] : memref<128x64xf32, #tpu.memory_space<vmem>>, vector<128x64xf32>
      tpu.vector_store %arg7[%c0_11, %c0_12], %12 {strides = array<i32>} : memref<128x64xf32, #tpu.memory_space<vmem>>, vector<128x64xf32>,
    } else {
    }
    %c0 = arith.constant 0 : index
    %c0_1 = arith.constant 0 : index
    %3 = vector.load %arg7[%c0, %c0_1] : memref<128x64xf32, #tpu.memory_space<vmem>>, vector<128x64xf32>
    %c0_2 = arith.constant 0 : index
    %c0_3 = arith.constant 0 : index
    %4 = vector.load %arg3[%c0_2, %c0_3] : memref<128x147xbf16, #tpu.memory_space<vmem>>, vector<128x147xbf16>
    %c0_4 = arith.constant 0 : index
    %c0_5 = arith.constant 0 : index
    %5 = vector.load %arg4[%c0_4, %c0_5] : memref<147x64xbf16, #tpu.memory_space<vmem>>, vector<147x64xbf16>
    %cst = arith.constant dense<0.000000e+00> : vector<128x64xf32>
    %6 = tpu.matmul %4, %5, %cst {dimension_numbers = #tpu.dot_dimension_numbers<[1], [0], [0], [1], [0, 0, 1, 1], [], []>} : vector<128x147xbf16>, vector<147x64xbf16>, vector<128x64xf32> -> vector<128x64xf32>
    %7 = arith.addf %3, %6 : vector<128x64xf32>
    %c0_6 = arith.constant 0 : index
    %c0_7 = arith.constant 0 : index
    %8 = vector.load %arg7[%c0_6, %c0_7] : memref<128x64xf32, #tpu.memory_space<vmem>>, vector<128x64xf32>
    tpu.vector_store %arg7[%c0_6, %c0_7], %7 {strides = array<i32>} : memref<128x64xf32, #tpu.memory_space<vmem>>, vector<128x64xf32>,
    %c0_i32_8 = arith.constant 0 : i32
    %9 = arith.cmpi eq, %arg2, %c0_i32_8 : i32
    %10 = arith.extui %9 : i1 to i32
    %c0_i32_9 = arith.constant 0 : i32
    %11 = arith.cmpi ne, %10, %c0_i32_9 : i32
    scf.if %11 {
      %c0_10 = arith.constant 0 : index
      %c0_11 = arith.constant 0 : index
      %12 = vector.load %arg7[%c0_10, %c0_11] : memref<128x64xf32, #tpu.memory_space<vmem>>, vector<128x64xf32>
      %c0_12 = arith.constant 0 : index
      %c0_13 = arith.constant 0 : index
      %13 = vector.load %arg5[%c0_12, %c0_13] : memref<1x64xf32, #tpu.memory_space<vmem>>, vector<1x64xf32>
      %14 = vector.broadcast %13 : vector<1x64xf32> to vector<128x64xf32>
      %15 = arith.addf %12, %14 : vector<128x64xf32>
      %cst_14 = arith.constant 0.000000e+00 : f32
      %16 = vector.broadcast %cst_14 : f32 to vector<128x64xf32>
      %17 = arith.maximumf %15, %16 : vector<128x64xf32>
      %18 = arith.truncf %17 : vector<128x64xf32> to vector<128x64xbf16>
      %c0_15 = arith.constant 0 : index
      %c0_16 = arith.constant 0 : index
      %19 = vector.load %arg6[%c0_15, %c0_16] : memref<128x64xbf16, #tpu.memory_space<vmem>>, vector<128x64xbf16>
      tpu.vector_store %arg6[%c0_15, %c0_16], %18 {strides = array<i32>} : memref<128x64xbf16, #tpu.memory_space<vmem>>, vector<128x64xbf16>,
    } else {
    }
    return
  }
  func.func @transform_0(%arg0: i32, %arg1: i32, %arg2: i32) -> (i32, i32) {
    %c0_i32 = arith.constant 0 : i32
    return %arg0, %arg2 : i32, i32
  }
  func.func @transform_1(%arg0: i32, %arg1: i32, %arg2: i32) -> (i32, i32) {
    %c0_i32 = arith.constant 0 : i32
    return %arg2, %arg1 : i32, i32
  }
  func.func @transform_2(%arg0: i32, %arg1: i32, %arg2: i32) -> (i32, i32) {
    %c0_i32 = arith.constant 0 : i32
    %c0_i32_0 = arith.constant 0 : i32
    return %c0_i32, %arg1 : i32, i32
  }
  func.func @transform_3(%arg0: i32, %arg1: i32, %arg2: i32) -> (i32, i32) {
    %c0_i32 = arith.constant 0 : i32
    return %arg0, %arg1 : i32, i32
  }
}

</mosaic_0001>

<llo_original>
// kernel: tpu_custom_call.1
$region0: #{tpu_custom_call.1}
  #allocation0 [shape = 'u32[]', space=smem, size = 0x4, offset = 0x4, fixed_abs, tag = 'smem constant byte address 0x4 - core index']
  #allocation1 [shape = 'u32[72,128]{1,0:T(1,128)}', space=vmem, size = 0x9000, scoped, tag = 'internal scratch']
  #allocation2 [shape = 'f32[128,64]{1,0:T(8,128)}', space=vmem, size = 0x10000, scoped, tag = 'scratch operand']
  %s0 = inlined_call_operand.vmem [shape: bf16[128,147], index: 0, kind: input, shape index: {}]
  %s1 = inlined_call_operand.vmem [shape: bf16[147,64], index: 1, kind: input, shape index: {}]
  %s2 = inlined_call_operand.vmem [shape: f32[1,64], index: 2, kind: input, shape index: {}]
  %s3 = inlined_call_operand.vmem [shape: bf16[128,64], index: 3, kind: output, shape index: {}]
  %s4 = sld [smem:[#allocation0]]
  $region30: #{tpu_custom_call.1} parent=0
    _
  %s6 = ssub.s32 1, %s4
  %s7 = scalar_select 0, %s6, %s4
  // Predicated region
  $region2: #{tpu_custom_call.1} parent=0 // pred_check
    _
  $region3: #{tpu_custom_call.1} parent=0 // pred_check_branch
    %9 = sbr.rel (0) target = $region5
  $region4: #{tpu_custom_call.1} parent=0 // pred_region
    _
  $region5: #{tpu_custom_call.1} parent=0 // pred_fallthru
    _
  // Predicated region
  $region6: #{tpu_custom_call.1} parent=0 // pred_check
    _
  $region7: #{tpu_custom_call.1} parent=0 // pred_check_branch
    %11 = sbr.rel (0) target = $region9
  $region8: #{tpu_custom_call.1} parent=0 // pred_region
    _
  $region9: #{tpu_custom_call.1} parent=0 // pred_fallthru
    _
  // Predicated region
  $region10: #{tpu_custom_call.1} parent=0 // pred_check
    _
  $region11: #{tpu_custom_call.1} parent=0 // pred_check_branch
    %13 = sbr.rel (0) target = $region13
  $region12: #{tpu_custom_call.1} parent=0 // pred_region
    _
  $region13: #{tpu_custom_call.1} parent=0 // pred_fallthru
    _
  %p15 = scmp.eq.s32.totalorder 0, 0
  // Predicated region
  $region14: #{tpu_custom_call.1} parent=0 // pred_check
    %p16 = pneg %p15
  $region15: #{tpu_custom_call.1} parent=0 // pred_check_branch
    %18 = sbr.rel (%p16) target = $region17
  $region16: #{tpu_custom_call.1} parent=0 // pred_region
    %vm19 = vcmask 523264
    %20 = vst.msk [vmem:[#allocation2] sm:$0xff] %vm19, 0.0
    %21 = vst.msk [vmem:[#allocation2 + $0x8] sm:$0xff] %vm19, 0.0
    %22 = vst.msk [vmem:[#allocation2 + $0x10] sm:$0xff] %vm19, 0.0
    %23 = vst.msk [vmem:[#allocation2 + $0x18] sm:$0xff] %vm19, 0.0
    %24 = vst.msk [vmem:[#allocation2 + $0x20] sm:$0xff] %vm19, 0.0
    %25 = vst.msk [vmem:[#allocation2 + $0x28] sm:$0xff] %vm19, 0.0
    %26 = vst.msk [vmem:[#allocation2 + $0x30] sm:$0xff] %vm19, 0.0
    %27 = vst.msk [vmem:[#allocation2 + $0x38] sm:$0xff] %vm19, 0.0
    %28 = vst.msk [vmem:[#allocation2 + $0x40] sm:$0xff] %vm19, 0.0
    %29 = vst.msk [vmem:[#allocation2 + $0x48] sm:$0xff] %vm19, 0.0
    %30 = vst.msk [vmem:[#allocation2 + $0x50] sm:$0xff] %vm19, 0.0
    %31 = vst.msk [vmem:[#allocation2 + $0x58] sm:$0xff] %vm19, 0.0
    %32 = vst.msk [vmem:[#allocation2 + $0x60] sm:$0xff] %vm19, 0.0
    %33 = vst.msk [vmem:[#allocation2 + $0x68] sm:$0xff] %vm19, 0.0
    %34 = vst.msk [vmem:[#allocation2 + $0x70] sm:$0xff] %vm19, 0.0
    %35 = vst.msk [vmem:[#allocation2 + $0x78] sm:$0xff] %vm19, 0.0
  $region17: #{tpu_custom_call.1} parent=0 // pred_fallthru
    _
  %v36 = vld [vmem:[#allocation2] sm:$0xff]
  %v37 = vld [vmem:[#allocation2 + $0x8] sm:$0xff]
  %v38 = vld [vmem:[#allocation2 + $0x10] sm:$0xff]
  %v39 = vld [vmem:[#allocation2 + $0x18] sm:$0xff]
  %v40 = vld [vmem:[#allocation2 + $0x20] sm:$0xff]
  %v41 = vld [vmem:[#allocation2 + $0x28] sm:$0xff]
  %v42 = vld [vmem:[#allocation2 + $0x30] sm:$0xff]
  %v43 = vld [vmem:[#allocation2 + $0x38] sm:$0xff]
  %v44 = vld [vmem:[#allocation2 + $0x40] sm:$0xff]
  %v45 = vld [vmem:[#allocation2 + $0x48] sm:$0xff]
  %v46 = vld [vmem:[#allocation2 + $0x50] sm:$0xff]
  %v47 = vld [vmem:[#allocation2 + $0x58] sm:$0xff]
  %v48 = vld [vmem:[#allocation2 + $0x60] sm:$0xff]
  %v49 = vld [vmem:[#allocation2 + $0x68] sm:$0xff]
  %v50 = vld [vmem:[#allocation2 + $0x70] sm:$0xff]
  %v51 = vld [vmem:[#allocation2 + $0x78] sm:$0xff]
  %v52 = vld [vmem:[%s0] sm:$0xff]
  %v53 = vld [vmem:[%s0 + $0x8] sm:$0xff]
  %v54 = vld [vmem:[%s0 + $0x10] sm:$0xff]
  %v55 = vld [vmem:[%s0 + $0x18] sm:$0xff]
  %v56 = vld [vmem:[%s0 + $0x20] sm:$0xff]
  %v57 = vld [vmem:[%s0 + $0x28] sm:$0xff]
  %v58 = vld [vmem:[%s0 + $0x30] sm:$0xff]
  %v59 = vld [vmem:[%s0 + $0x38] sm:$0xff]
  %v60 = vld [vmem:[%s0 + $0x40] sm:$0xff]
  %v61 = vld [vmem:[%s0 + $0x48] sm:$0xff]
  %v62 = vld [vmem:[%s0 + $0x50] sm:$0xff]
  %v63 = vld [vmem:[%s0 + $0x58] sm:$0xff]
  %v64 = vld [vmem:[%s0 + $0x60] sm:$0xff]
  %v65 = vld [vmem:[%s0 + $0x68] sm:$0xff]
  %v66 = vld [vmem:[%s0 + $0x70] sm:$0xff]
  %v67 = vld [vmem:[%s0 + $0x78] sm:$0xff]
  %v68 = vld [vmem:[%s1] sm:$0xf]
  %v69 = vld [vmem:[%s1 + $0x4] sm:$0xf]
  %v70 = vld [vmem:[%s1 + $0x8] sm:$0xf]
  %v71 = vld [vmem:[%s1 + $0xc] sm:$0xf]
  %v72 = vld [vmem:[%s1 + $0x10] sm:$0xf]
  %v73 = vld [vmem:[%s1 + $0x14] sm:$0xf]
  %v74 = vld [vmem:[%s1 + $0x18] sm:$0xf]
  %v75 = vld [vmem:[%s1 + $0x1c] sm:$0xf]
  %v76 = vld [vmem:[%s1 + $0x20] sm:$0xf]
  %v77 = vld [vmem:[%s1 + $0x24] sm:$0xf]
  %v78 = vld [vmem:[%s1 + $0x28] sm:$0xf]
  %v79 = vld [vmem:[%s1 + $0x2c] sm:$0xf]
  %v80 = vld [vmem:[%s1 + $0x30] sm:$0xf]
  %v81 = vld [vmem:[%s1 + $0x34] sm:$0xf]
  %v82 = vld [vmem:[%s1 + $0x38] sm:$0xf]
  %v83 = vld [vmem:[%s1 + $0x3c] sm:$0xf]
  %v84 = vld [vmem:[%s1 + $0x40] sm:$0xf]
  %v85 = vld [vmem:[%s1 + $0x44] sm:$0xf]
  %v86 = vld [vmem:[%s1 + $0x48] sm:$0x3]
  %v103 = vunpack.c.l.b16 %v52
  %v104 = vunpack.c.h.b16 %v52
  %v105 = vunpack.c.l.b16 %v53
  %v106 = vunpack.c.h.b16 %v53
  %v107 = vunpack.c.l.b16 %v54
  %v108 = vunpack.c.h.b16 %v54
  %v109 = vunpack.c.l.b16 %v55
  %v110 = vunpack.c.h.b16 %v55
  %v111 = vunpack.c.l.b16 %v56
  %v112 = vunpack.c.h.b16 %v56
  %v113 = vunpack.c.l.b16 %v57
  %v114 = vunpack.c.h.b16 %v57
  %v115 = vunpack.c.l.b16 %v58
  %v116 = vunpack.c.h.b16 %v58
  %v117 = vunpack.c.l.b16 %v59
  %v118 = vunpack.c.h.b16 %v59
  %v119 = vunpack.c.l.b16 %v60
  %v120 = vunpack.c.h.b16 %v60
  %v121 = vunpack.c.l.b16 %v61
  %v122 = vunpack.c.h.b16 %v61
  %v123 = vunpack.c.l.b16 %v62
  %v124 = vunpack.c.h.b16 %v62
  %v125 = vunpack.c.l.b16 %v63
  %v126 = vunpack.c.h.b16 %v63
  %v127 = vunpack.c.l.b16 %v64
  %v128 = vunpack.c.h.b16 %v64
  %v129 = vunpack.c.l.b16 %v65
  %v130 = vunpack.c.h.b16 %v65
  %v131 = vunpack.c.l.b16 %v66
  %v132 = vunpack.c.h.b16 %v66
  %v133 = vunpack.c.l.b16 %v67
  %v134 = vunpack.c.h.b16 %v67
  %v135 = vpack.c.b16 %v105, %v103
  %v136 = vpack.c.b16 %v106, %v104
  %v137 = vpack.c.b16 %v109, %v107
  %v138 = vpack.c.b16 %v110, %v108
  %v139 = vpack.c.b16 %v113, %v111
  %v140 = vpack.c.b16 %v114, %v112
  %v141 = vpack.c.b16 %v117, %v115
  %v142 = vpack.c.b16 %v118, %v116
  %v143 = vpack.c.b16 %v121, %v119
  %v144 = vpack.c.b16 %v122, %v120
  %v145 = vpack.c.b16 %v125, %v123
  %v146 = vpack.c.b16 %v126, %v124
  %v147 = vpack.c.b16 %v129, %v127
  %v148 = vpack.c.b16 %v130, %v128
  %v149 = vpack.c.b16 %v133, %v131
  %v150 = vpack.c.b16 %v134, %v132
  %v178 = vunpack.c.l.b16 %v68
  %v179 = vunpack.c.l.b16 %v69
  %v180 = vunpack.c.l.b16 %v70
  %v181 = vunpack.c.l.b16 %v71
  %v182 = vunpack.c.l.b16 %v72
  %v183 = vunpack.c.l.b16 %v73
  %v184 = vunpack.c.l.b16 %v74
  %v185 = vunpack.c.l.b16 %v75
  %v186 = vunpack.c.l.b16 %v76
  %v187 = vunpack.c.l.b16 %v77
  %v188 = vunpack.c.l.b16 %v78
  %v189 = vunpack.c.l.b16 %v79
  %v190 = vunpack.c.l.b16 %v80
  %v191 = vunpack.c.l.b16 %v81
  %v192 = vunpack.c.l.b16 %v82
  %v193 = vunpack.c.l.b16 %v83
  %v194 = vunpack.c.l.b16 %v84
  %v195 = vunpack.c.l.b16 %v85
  %v196 = vunpack.c.l.b16 %v86
  %v197 = vpack.c.b16 %v179, %v178
  %v198 = vpack.c.b16 %v181, %v180
  %v199 = vpack.c.b16 %v183, %v182
  %v200 = vpack.c.b16 %v185, %v184
  %v201 = vpack.c.b16 %v187, %v186
  %v202 = vpack.c.b16 %v189, %v188
  %v203 = vpack.c.b16 %v191, %v190
  %v204 = vpack.c.b16 %v193, %v192
  %v205 = vpack.c.b16 %v195, %v194
  %v206 = vpack.c.b16 %v196, %v196
  %vm216 = vcmask 154624
  %v218 = vsel %vm216, %v136, 0
  %v221 = vsel %vm216, %v138, 0
  %v224 = vsel %vm216, %v140, 0
  %v227 = vsel %vm216, %v142, 0
  %v230 = vsel %vm216, %v144, 0
  %v233 = vsel %vm216, %v146, 0
  %v236 = vsel %vm216, %v148, 0
  %v239 = vsel %vm216, %v150, 0
  %vm241 = vcmask 1040384
  %vm242 = vcmask 1041408
  %v243 = vsel %vm241, 4294967295, 65535
  %v244 = vsel %vm242, %v243, 0
  %v246 = vand.u32 %v206, %v244
  %248 = vmatpush.bf16.msra.mxu0 %v204
  %249 = vmatpush.bf16.msra.mxu0 %v203
  %250 = vmatpush.bf16.msra.mxu0 %v202
  %251 = vmatpush.bf16.msra.mxu0 %v201
  %252 = vmatpush.bf16.msra.mxu0 %v200
  %253 = vmatpush.bf16.msra.mxu0 %v199
  %254 = vmatpush.bf16.msra.mxu0 %v198
  %255 = vmatpush.bf16.msra.mxu0 %v197
  %256 = vmatmul.bf16.gmra.mxu0 %v135
  %v257 = vpop.f32.mrf.mxu0
  %v258 = vadd.f32 0.0, %v257
  %v259 = vpop.f32.mrf.mxu0
  %v260 = vadd.f32 0.0, %v259
  %261 = vmatmul.bf16.gmra.mxu0 %v137
  %v262 = vpop.f32.mrf.mxu0
  %v263 = vadd.f32 0.0, %v262
  %v264 = vpop.f32.mrf.mxu0
  %v265 = vadd.f32 0.0, %v264
  %266 = vmatmul.bf16.gmra.mxu0 %v139
  %v267 = vpop.f32.mrf.mxu0
  %v268 = vadd.f32 0.0, %v267
  %v269 = vpop.f32.mrf.mxu0
  %v270 = vadd.f32 0.0, %v269
  %271 = vmatmul.bf16.gmra.mxu0 %v141
  %v272 = vpop.f32.mrf.mxu0
  %v273 = vadd.f32 0.0, %v272
  %v274 = vpop.f32.mrf.mxu0
  %v275 = vadd.f32 0.0, %v274
  %276 = vmatmul.bf16.gmra.mxu0 %v143
  %v277 = vpop.f32.mrf.mxu0
  %v278 = vadd.f32 0.0, %v277
  %v279 = vpop.f32.mrf.mxu0
  %v280 = vadd.f32 0.0, %v279
  %281 = vmatmul.bf16.gmra.mxu0 %v145
  %v282 = vpop.f32.mrf.mxu0
  %v283 = vadd.f32 0.0, %v282
  %v284 = vpop.f32.mrf.mxu0
  %v285 = vadd.f32 0.0, %v284
  %286 = vmatmul.bf16.gmra.mxu0 %v147
  %v287 = vpop.f32.mrf.mxu0
  %v288 = vadd.f32 0.0, %v287
  %v289 = vpop.f32.mrf.mxu0
  %v290 = vadd.f32 0.0, %v289
  %291 = vmatmul.bf16.gmra.mxu0 %v149
  %v292 = vpop.f32.mrf.mxu0
  %v293 = vadd.f32 0.0, %v292
  %v294 = vpop.f32.mrf.mxu0
  %v295 = vadd.f32 0.0, %v294
  %296 = vdwg.mxu0
  %297 = vmatpush.bf16.msra.mxu0 0
  %298 = vmatpush.bf16.msra.mxu0 0
  %299 = vmatpush.bf16.msra.mxu0 0
  %300 = vmatpush.bf16.msra.mxu0 0
  %301 = vmatpush.bf16.msra.mxu0 0
  %302 = vmatpush.bf16.msra.mxu0 0
  %303 = vmatpush.bf16.msra.mxu0 %v246
  %304 = vmatpush.bf16.msra.mxu0 %v205
  %305 = vmatmul.bf16.gmra.mxu0 %v218
  %v306 = vpop.f32.mrf.mxu0
  %v307 = vadd.f32 %v258, %v306
  %v308 = vpop.f32.mrf.mxu0
  %v309 = vadd.f32 %v260, %v308
  %310 = vmatmul.bf16.gmra.mxu0 %v221
  %v311 = vpop.f32.mrf.mxu0
  %v312 = vadd.f32 %v263, %v311
  %v313 = vpop.f32.mrf.mxu0
  %v314 = vadd.f32 %v265, %v313
  %315 = vmatmul.bf16.gmra.mxu0 %v224
  %v316 = vpop.f32.mrf.mxu0
  %v317 = vadd.f32 %v268, %v316
  %v318 = vpop.f32.mrf.mxu0
  %v319 = vadd.f32 %v270, %v318
  %320 = vmatmul.bf16.gmra.mxu0 %v227
  %v321 = vpop.f32.mrf.mxu0
  %v322 = vadd.f32 %v273, %v321
  %v323 = vpop.f32.mrf.mxu0
  %v324 = vadd.f32 %v275, %v323
  %325 = vmatmul.bf16.gmra.mxu0 %v230
  %v326 = vpop.f32.mrf.mxu0
  %v327 = vadd.f32 %v278, %v326
  %v328 = vpop.f32.mrf.mxu0
  %v329 = vadd.f32 %v280, %v328
  %330 = vmatmul.bf16.gmra.mxu0 %v233
  %v331 = vpop.f32.mrf.mxu0
  %v332 = vadd.f32 %v283, %v331
  %v333 = vpop.f32.mrf.mxu0
  %v334 = vadd.f32 %v285, %v333
  %335 = vmatmul.bf16.gmra.mxu0 %v236
  %v336 = vpop.f32.mrf.mxu0
  %v337 = vadd.f32 %v288, %v336
  %v338 = vpop.f32.mrf.mxu0
  %v339 = vadd.f32 %v290, %v338
  %340 = vmatmul.bf16.gmra.mxu0 %v239
  %v341 = vpop.f32.mrf.mxu0
  %v342 = vadd.f32 %v293, %v341
  %v343 = vpop.f32.mrf.mxu0
  %v344 = vadd.f32 %v295, %v343
  %345 = vdwg.mxu0
  %v346 = vadd.f32 %v36, %v307
  %v347 = vadd.f32 %v37, %v309
  %v348 = vadd.f32 %v38, %v312
  %v349 = vadd.f32 %v39, %v314
  %v350 = vadd.f32 %v40, %v317
  %v351 = vadd.f32 %v41, %v319
  %v352 = vadd.f32 %v42, %v322
  %v353 = vadd.f32 %v43, %v324
  %v354 = vadd.f32 %v44, %v327
  %v355 = vadd.f32 %v45, %v329
  %v356 = vadd.f32 %v46, %v332
  %v357 = vadd.f32 %v47, %v334
  %v358 = vadd.f32 %v48, %v337
  %v359 = vadd.f32 %v49, %v339
  %v360 = vadd.f32 %v50, %v342
  %v361 = vadd.f32 %v51, %v344
  %vm362 = vcmask 523264
  %363 = vst.msk [vmem:[#allocation2] sm:$0xff] %vm362, %v346
  %364 = vst.msk [vmem:[#allocation2 + $0x8] sm:$0xff] %vm362, %v347
  %365 = vst.msk [vmem:[#allocation2 + $0x10] sm:$0xff] %vm362, %v348
  %366 = vst.msk [vmem:[#allocation2 + $0x18] sm:$0xff] %vm362, %v349
  %367 = vst.msk [vmem:[#allocation2 + $0x20] sm:$0xff] %vm362, %v350
  %368 = vst.msk [vmem:[#allocation2 + $0x28] sm:$0xff] %vm362, %v351
  %369 = vst.msk [vmem:[#allocation2 + $0x30] sm:$0xff] %vm362, %v352
  %370 = vst.msk [vmem:[#allocation2 + $0x38] sm:$0xff] %vm362, %v353
  %371 = vst.msk [vmem:[#allocation2 + $0x40] sm:$0xff] %vm362, %v354
  %372 = vst.msk [vmem:[#allocation2 + $0x48] sm:$0xff] %vm362, %v355
  %373 = vst.msk [vmem:[#allocation2 + $0x50] sm:$0xff] %vm362, %v356
  %374 = vst.msk [vmem:[#allocation2 + $0x58] sm:$0xff] %vm362, %v357
  %375 = vst.msk [vmem:[#allocation2 + $0x60] sm:$0xff] %vm362, %v358
  %376 = vst.msk [vmem:[#allocation2 + $0x68] sm:$0xff] %vm362, %v359
  %377 = vst.msk [vmem:[#allocation2 + $0x70] sm:$0xff] %vm362, %v360
  %378 = vst.msk [vmem:[#allocation2 + $0x78] sm:$0xff] %vm362, %v361
  // Predicated region
  $region18: #{tpu_custom_call.1} parent=0 // pred_check
    %p379 = pneg %p15
  $region19: #{tpu_custom_call.1} parent=0 // pred_check_branch
    %381 = sbr.rel (%p379) target = $region21
  $region20: #{tpu_custom_call.1} parent=0 // pred_region
    %v382 = vld [vmem:[#allocation2] sm:$0xff]
    %v383 = vld [vmem:[#allocation2 + $0x8] sm:$0xff]
    %v384 = vld [vmem:[#allocation2 + $0x10] sm:$0xff]
    %v385 = vld [vmem:[#allocation2 + $0x18] sm:$0xff]
    %v386 = vld [vmem:[#allocation2 + $0x20] sm:$0xff]
    %v387 = vld [vmem:[#allocation2 + $0x28] sm:$0xff]
    %v388 = vld [vmem:[#allocation2 + $0x30] sm:$0xff]
    %v389 = vld [vmem:[#allocation2 + $0x38] sm:$0xff]
    %v390 = vld [vmem:[#allocation2 + $0x40] sm:$0xff]
    %v391 = vld [vmem:[#allocation2 + $0x48] sm:$0xff]
    %v392 = vld [vmem:[#allocation2 + $0x50] sm:$0xff]
    %v393 = vld [vmem:[#allocation2 + $0x58] sm:$0xff]
    %v394 = vld [vmem:[#allocation2 + $0x60] sm:$0xff]
    %v395 = vld [vmem:[#allocation2 + $0x68] sm:$0xff]
    %v396 = vld [vmem:[#allocation2 + $0x70] sm:$0xff]
    %v397 = vld [vmem:[#allocation2 + $0x78] sm:$0xff]
    %v398 = vld [vmem:[%s2] sm:$0x1]
    %v400 = vperm.slane %v398, 0
    %v402 = vadd.f32 %v382, %v400
    %v403 = vadd.f32 %v383, %v400
    %v404 = vadd.f32 %v384, %v400
    %v405 = vadd.f32 %v385, %v400
    %v406 = vadd.f32 %v386, %v400
    %v407 = vadd.f32 %v387, %v400
    %v408 = vadd.f32 %v388, %v400
    %v409 = vadd.f32 %v389, %v400
    %v410 = vadd.f32 %v390, %v400
    %v411 = vadd.f32 %v391, %v400
    %v412 = vadd.f32 %v392, %v400
    %v413 = vadd.f32 %v393, %v400
    %v414 = vadd.f32 %v394, %v400
    %v415 = vadd.f32 %v395, %v400
    %v416 = vadd.f32 %v396, %v400
    %v417 = vadd.f32 %v397, %v400
    %v418 = vmax.f32 %v402, 0.0
    %v419 = vmax.f32 %v403, 0.0
    %v420 = vmax.f32 %v404, 0.0
    %v421 = vmax.f32 %v405, 0.0
    %v422 = vmax.f32 %v406, 0.0
    %v423 = vmax.f32 %v407, 0.0
    %v424 = vmax.f32 %v408, 0.0
    %v425 = vmax.f32 %v409, 0.0
    %v426 = vmax.f32 %v410, 0.0
    %v427 = vmax.f32 %v411, 0.0
    %v428 = vmax.f32 %v412, 0.0
    %v429 = vmax.f32 %v413, 0.0
    %v430 = vmax.f32 %v414, 0.0
    %v431 = vmax.f32 %v415, 0.0
    %v432 = vmax.f32 %v416, 0.0
    %v433 = vmax.f32 %v417, 0.0
    %v434 = vpack.c.bf16 %v418, %v418
    %v435 = vpack.c.bf16 %v419, %v419
    %v436 = vpack.c.bf16 %v420, %v420
    %v437 = vpack.c.bf16 %v421, %v421
    %v438 = vpack.c.bf16 %v422, %v422
    %v439 = vpack.c.bf16 %v423, %v423
    %v440 = vpack.c.bf16 %v424, %v424
    %v441 = vpack.c.bf16 %v425, %v425
    %v442 = vpack.c.bf16 %v426, %v426
    %v443 = vpack.c.bf16 %v427, %v427
    %v444 = vpack.c.bf16 %v428, %v428
    %v445 = vpack.c.bf16 %v429, %v429
    %v446 = vpack.c.bf16 %v430, %v430
    %v447 = vpack.c.bf16 %v431, %v431
    %v448 = vpack.c.bf16 %v432, %v432
    %v449 = vpack.c.bf16 %v433, %v433
    %vm450 = vcmask 519168
    %451 = vst.msk [vmem:[%s3] sm:$0xf] %vm450, %v434
    %452 = vst.msk [vmem:[%s3 + $0x4] sm:$0xf] %vm450, %v435
    %453 = vst.msk [vmem:[%s3 + $0x8] sm:$0xf] %vm450, %v436
    %454 = vst.msk [vmem:[%s3 + $0xc] sm:$0xf] %vm450, %v437
    %455 = vst.msk [vmem:[%s3 + $0x10] sm:$0xf] %vm450, %v438
    %456 = vst.msk [vmem:[%s3 + $0x14] sm:$0xf] %vm450, %v439
    %457 = vst.msk [vmem:[%s3 + $0x18] sm:$0xf] %vm450, %v440
    %458 = vst.msk [vmem:[%s3 + $0x1c] sm:$0xf] %vm450, %v441
    %459 = vst.msk [vmem:[%s3 + $0x20] sm:$0xf] %vm450, %v442
    %460 = vst.msk [vmem:[%s3 + $0x24] sm:$0xf] %vm450, %v443
    %461 = vst.msk [vmem:[%s3 + $0x28] sm:$0xf] %vm450, %v444
    %462 = vst.msk [vmem:[%s3 + $0x2c] sm:$0xf] %vm450, %v445
    %463 = vst.msk [vmem:[%s3 + $0x30] sm:$0xf] %vm450, %v446
    %464 = vst.msk [vmem:[%s3 + $0x34] sm:$0xf] %vm450, %v447
    %465 = vst.msk [vmem:[%s3 + $0x38] sm:$0xf] %vm450, %v448
    %466 = vst.msk [vmem:[%s3 + $0x3c] sm:$0xf] %vm450, %v449
  $region21: #{tpu_custom_call.1} parent=0 // pred_fallthru
    _
  // Predicated region
  $region22: #{tpu_custom_call.1} parent=0 // pred_check
    _
  $region23: #{tpu_custom_call.1} parent=0 // pred_check_branch
    %468 = sbr.rel (0) target = $region25
  $region24: #{tpu_custom_call.1} parent=0 // pred_region
    _
  $region25: #{tpu_custom_call.1} parent=0 // pred_fallthru
    _
  // Predicated region
  $region26: #{tpu_custom_call.1} parent=0 // pred_check
    _
  $region27: #{tpu_custom_call.1} parent=0 // pred_check_branch
    %470 = sbr.rel (0) target = $region29
  $region28: #{tpu_custom_call.1} parent=0 // pred_region
    _
  $region29: #{tpu_custom_call.1} parent=0 // pred_fallthru
    _

</llo_original>
